<compile_context>
chip_gen: v7x
topology: tpu7x:2x2x1
jax: 0.10.0
libtpu: 0.0.40
codegen_flags: <defaults>
</compile_context>

<pallas_src>
import functools

import jax
import jax.numpy as jnp
from jax.experimental import pallas as pl
from jax.experimental.pallas import tpu as pltpu


def _round_up(x: int, m: int) -> int:
    return ((x + m - 1) // m) * m


def _cdiv(a: int, b: int) -> int:
    return (a + b - 1) // b


def _vmem_limit_bytes() -> int:
    """Device VMEM capacity minus ~15% headroom (fallback: 64 MiB)."""
    try:
        cap = int(pltpu.get_tpu_info().vmem_capacity_bytes)
        return int(cap * 0.85)
    except Exception:
        return 64 * 1024 * 1024


# ----------------------------- kernels --------------------------------------


def _sn2h_kernel_fused(x_ref, w1_ref, b1_ref, w2_ref, b2_ref, o_ref, *, afunc, bound):
    # fc1: (tB, K) @ (K, M) -> f32 accumulate on the MXU (bf16 operands).
    h = jnp.dot(x_ref[...], w1_ref[...], preferred_element_type=jnp.float32)
    h = afunc(h + b1_ref[...])                     # bias + activation in f32

    # fc2: (tB, M) @ (M, N) -> f32 accumulate, fused in the same grid step.
    # NOTE: h is intentionally downcast to the weight dtype (bf16) before the
    # second matmul; accumulation stays f32 (standard mixed precision).
    out = jnp.dot(h.astype(w2_ref.dtype), w2_ref[...],
                  preferred_element_type=jnp.float32)
    out = out + b2_ref[...]
    o_ref[...] = jnp.clip(out, -bound, bound).astype(o_ref.dtype)


def _sn2h_kernel_ksplit(x_ref, w1_ref, b1_ref, w2_ref, b2_ref, o_ref, acc_ref,
                        *, afunc, bound):
    k = pl.program_id(1)

    @pl.when(k == 0)
    def _():
        acc_ref[...] = jnp.zeros_like(acc_ref)

    # Partial fc1 contribution for this K slice, accumulated in f32 scratch.
    acc_ref[...] += jnp.dot(x_ref[...], w1_ref[...],
                            preferred_element_type=jnp.float32)

    @pl.when(k == pl.num_programs(1) - 1)
    def _():
        h = afunc(acc_ref[...] + b1_ref[...])
        out = jnp.dot(h.astype(w2_ref.dtype), w2_ref[...],
                      preferred_element_type=jnp.float32)
        out = out + b2_ref[...]
        o_ref[...] = jnp.clip(out, -bound, bound).astype(o_ref.dtype)


# ----------------------------- wrapper ---------------------------------------


def prepare_sn2h_params(w1, b1, w2, b2, compute_dtype=jnp.bfloat16):
    """One-time parameter prep: transpose, pad to 128 lanes, cast to bf16.

    Args use PyTorch layout: w1 (module_size, dim_in), w2 (dim_out, module_size).
    """
    module_size, dim_in = w1.shape
    dim_out = w2.shape[0]
    K = _round_up(dim_in, 128)
    M = _round_up(module_size, 128)
    N = _round_up(dim_out, 128)

    w1p = jnp.zeros((K, M), compute_dtype).at[:dim_in, :module_size].set(
        jnp.transpose(w1).astype(compute_dtype))
    b1p = jnp.zeros((1, M), jnp.float32).at[0, :module_size].set(
        b1.astype(jnp.float32))
    w2p = jnp.zeros((M, N), compute_dtype).at[:module_size, :dim_out].set(
        jnp.transpose(w2).astype(compute_dtype))
    b2p = jnp.zeros((1, N), jnp.float32).at[0, :dim_out].set(
        b2.astype(jnp.float32))

    return dict(w1=w1p, b1=b1p, w2=w2p, b2=b2p,
                dim_in=dim_in, dim_out=dim_out, K=K, M=M, N=N,
                compute_dtype=compute_dtype)


def sn2h_forward(x, params, *, bound, afunc, block_b: int = 512,
                 vmem_limit_bytes: int | None = None, k_block: int | None = None):
    """Pallas SN2h forward using prepared (padded/cast) parameters."""
    B = x.shape[0]
    x2 = x.reshape(B, -1)
    assert x2.shape[1] == params["dim_in"], (x2.shape, params["dim_in"])

    K, M, N = params["K"], params["M"], params["N"]
    cdt = params["compute_dtype"]
    out_dtype = x.dtype
    in_bytes = jnp.dtype(cdt).itemsize
    out_bytes = jnp.dtype(out_dtype).itemsize

    if vmem_limit_bytes is None:
        vmem_limit_bytes = _vmem_limit_bytes()

    # Batch tile: minimize padding, sublane-align for the compute dtype
    # (8 rows f32, 16 rows bf16, 32 rows int8).
    sub = 8 * max(1, 4 // in_bytes)
    nsteps = max(1, _cdiv(B, block_b))
    tB = _round_up(_cdiv(B, nsteps), sub)
    Bp = nsteps * tB

    # --- plan: fused (single grid axis) vs K-split, from the VMEM budget ----
    budget = vmem_limit_bytes - (4 << 20)        # slack for temporaries
    resident = M * N * in_bytes + 2 * tB * N * out_bytes + 4 * (M + N)
    fused_need = resident + 2 * tB * K * in_bytes + K * M * in_bytes + 4 * tB * M

    if k_block is not None:
        tK = _round_up(min(int(k_block), K), 128)
        nK = _cdiv(K, tK)
        tK = _round_up(_cdiv(K, nK), 128)
    elif fused_need <= budget:
        tK, nK = K, 1
    else:
        acc_bytes = 4 * tB * M
        avail = budget - resident - acc_bytes
        per_k_col = 2 * tB * in_bytes + 2 * M * in_bytes   # x (2 bufs) + W1 (2 bufs)
        tK = max(128, (avail // per_k_col) // 128 * 128)
        nK = _cdiv(K, tK)
        tK = _round_up(_cdiv(K, nK), 128)
    if nK == 1:
        tK = K
    Kp = nK * tK

    # --- pad/cast x only when necessary ------------------------------------
    if x2.shape == (Bp, Kp) and x2.dtype == cdt:
        xp = x2
    else:
        xp = jnp.zeros((Bp, Kp), cdt).at[:B, :x2.shape[1]].set(x2.astype(cdt))

    w1p = params["w1"]
    if w1p.shape[0] != Kp:                       # only if K-split padded K further
        w1p = jnp.zeros((Kp, M), cdt).at[:w1p.shape[0], :].set(w1p)

    bound = float(bound)

    if nK == 1:
        kernel = functools.partial(_sn2h_kernel_fused, afunc=afunc, bound=bound)
        grid = (Bp // tB,)
        in_specs = [
            pl.BlockSpec((tB, Kp), lambda i: (i, 0)),                 # x: streamed
            pl.BlockSpec((Kp, M), lambda i: (0, 0),
                         pipeline_mode=pl.Buffered(1)),               # W1: resident
            pl.BlockSpec((1, M), lambda i: (0, 0),
                         pipeline_mode=pl.Buffered(1)),               # b1: resident
            pl.BlockSpec((M, N), lambda i: (0, 0),
                         pipeline_mode=pl.Buffered(1)),               # W2: resident
            pl.BlockSpec((1, N), lambda i: (0, 0),
                         pipeline_mode=pl.Buffered(1)),               # b2: resident
        ]
        out_specs = pl.BlockSpec((tB, N), lambda i: (i, 0))
        scratch_shapes = []
        dims = ("parallel",)
    else:
        kernel = functools.partial(_sn2h_kernel_ksplit, afunc=afunc, bound=bound)
        grid = (Bp // tB, nK)                    # reduction (K) axis last
        in_specs = [
            pl.BlockSpec((tB, tK), lambda i, k: (i, k)),              # x: streamed
            pl.BlockSpec((tK, M), lambda i, k: (k, 0)),               # W1: streamed over K
            pl.BlockSpec((1, M), lambda i, k: (0, 0),
                         pipeline_mode=pl.Buffered(1)),               # b1: resident
            pl.BlockSpec((M, N), lambda i, k: (0, 0),
                         pipeline_mode=pl.Buffered(1)),               # W2: resident
            pl.BlockSpec((1, N), lambda i, k: (0, 0),
                         pipeline_mode=pl.Buffered(1)),               # b2: resident
        ]
        out_specs = pl.BlockSpec((tB, N), lambda i, k: (i, 0))
        scratch_shapes = [pltpu.VMEM((tB, M), jnp.float32)]
        dims = ("parallel", "arbitrary")

    out = pl.pallas_call(
        kernel,
        out_shape=jax.ShapeDtypeStruct((Bp, N), out_dtype),
        grid_spec=pltpu.PrefetchScalarGridSpec(
            num_scalar_prefetch=0,
            grid=grid,
            in_specs=in_specs,
            out_specs=out_specs,
            scratch_shapes=scratch_shapes,
        ),
        compiler_params=pltpu.CompilerParams(
            dimension_semantics=dims,
            vmem_limit_bytes=int(vmem_limit_bytes),
        ),
    )(xp, w1p, params["b1"], params["w2"], params["b2"])

    return out[:B, :params["dim_out"]]


# ----------------------------- reference / test ------------------------------


def _reference(x, w1, b1, w2, b2, bound, afunc):
    x2 = x.reshape(x.shape[0], -1).astype(jnp.float32)
    h = afunc(x2 @ w1.T.astype(jnp.float32) + b1.astype(jnp.float32))
    out = h @ w2.T.astype(jnp.float32) + b2.astype(jnp.float32)
    return jnp.clip(out, -bound, bound)


if __name__ == "__main__":
    key = jax.random.PRNGKey(0)
    k_x, k_w1, k_b1, k_w2, k_b2 = jax.random.split(key, 5)

    # SN2h(shape_in=(4, 16, 16), dim_out=10, module_size=32, bound=1.0, afunc=tanh)
    B, C, H, W = 2, 4, 16, 16
    dim_in = C * H * W
    module_size = 32
    dim_out = 10
    bound = 1.0
    afunc = jnp.tanh

    x = jax.random.normal(k_x, (B, C, H, W), jnp.float32)
    w1 = jax.random.normal(k_w1, (module_size, dim_in), jnp.float32) * 0.05
    b1 = jax.random.normal(k_b1, (module_size,), jnp.float32) * 0.05
    w2 = jax.random.normal(k_w2, (dim_out, module_size), jnp.float32) * 0.05
    b2 = jax.random.normal(k_b2, (dim_out,), jnp.float32) * 0.05

    params = prepare_sn2h_params(w1, b1, w2, b2)   # one-time weight prep

    # Fused path (default plan at these shapes).
    out = sn2h_forward(x, params, bound=bound, afunc=afunc)
    out = jax.block_until_ready(out)

    # K-split path (forced small K block) to exercise the accumulator kernel.
    out_ks = sn2h_forward(x, params, bound=bound, afunc=afunc, k_block=256)
    out_ks = jax.block_until_ready(out_ks)

    ref = _reference(x, w1, b1, w2, b2, bound, afunc)
    assert out.shape == (B, dim_out), out.shape
    # Tolerance reflects bf16 matmul operands with f32 accumulation.
    assert jnp.allclose(out.astype(jnp.float32), ref, atol=3e-2, rtol=3e-2), (
        "fused path mismatch vs reference"
    )
    assert jnp.allclose(out_ks.astype(jnp.float32), ref, atol=3e-2, rtol=3e-2), (
        "K-split path mismatch vs reference"
    )
    print("KERNEL_OK")
</pallas_src>

<mosaic_0001>
module attributes {stable_mosaic.version = 11 : i64} {
  func.func @_sn2h_kernel_fused(%arg0: i32, %arg1: memref<16x1024xbf16, #tpu.memory_space<vmem>>, %arg2: memref<1024x128xbf16, #tpu.memory_space<vmem>>, %arg3: memref<1x128xf32, #tpu.memory_space<vmem>>, %arg4: memref<128x128xbf16, #tpu.memory_space<vmem>>, %arg5: memref<1x128xf32, #tpu.memory_space<vmem>>, %arg6: memref<16x128xf32, #tpu.memory_space<vmem>>) attributes {dimension_semantics = [#tpu.dimension_semantics<parallel>], iteration_bounds = array<i64: 1>, scalar_prefetch = 0 : i64, scratch_operands = 0 : i64, tpu.core_type = #tpu.core_type<tc>, window_params = [{transform_indices = @transform_0, window_bounds = array<i64: 16, 1024>}, {pipeline_mode = #tpu.pipeline_mode<synchronous>, transform_indices = @transform_1, window_bounds = array<i64: 1024, 128>}, {pipeline_mode = #tpu.pipeline_mode<synchronous>, transform_indices = @transform_2, window_bounds = array<i64: 1, 128>}, {pipeline_mode = #tpu.pipeline_mode<synchronous>, transform_indices = @transform_3, window_bounds = array<i64: 128, 128>}, {pipeline_mode = #tpu.pipeline_mode<synchronous>, transform_indices = @transform_4, window_bounds = array<i64: 1, 128>}, {transform_indices = @transform_5, window_bounds = array<i64: 16, 128>}]} {
    %c0 = arith.constant 0 : index
    %c0_0 = arith.constant 0 : index
    %0 = vector.load %arg1[%c0, %c0_0] : memref<16x1024xbf16, #tpu.memory_space<vmem>>, vector<16x1024xbf16>
    %c0_1 = arith.constant 0 : index
    %c0_2 = arith.constant 0 : index
    %1 = vector.load %arg2[%c0_1, %c0_2] : memref<1024x128xbf16, #tpu.memory_space<vmem>>, vector<1024x128xbf16>
    %cst = arith.constant dense<0.000000e+00> : vector<16x128xf32>
    %2 = tpu.matmul %0, %1, %cst {dimension_numbers = #tpu.dot_dimension_numbers<[1], [0], [0], [1], [0, 0, 1, 1], [], []>} : vector<16x1024xbf16>, vector<1024x128xbf16>, vector<16x128xf32> -> vector<16x128xf32>
    %c0_3 = arith.constant 0 : index
    %c0_4 = arith.constant 0 : index
    %3 = vector.load %arg3[%c0_3, %c0_4] : memref<1x128xf32, #tpu.memory_space<vmem>>, vector<1x128xf32>
    %4 = vector.broadcast %3 : vector<1x128xf32> to vector<16x128xf32>
    %5 = arith.addf %2, %4 : vector<16x128xf32>
    %6 = math.tanh %5 : vector<16x128xf32>
    %7 = arith.truncf %6 : vector<16x128xf32> to vector<16x128xbf16>
    %c0_5 = arith.constant 0 : index
    %c0_6 = arith.constant 0 : index
    %8 = vector.load %arg4[%c0_5, %c0_6] : memref<128x128xbf16, #tpu.memory_space<vmem>>, vector<128x128xbf16>
    %cst_7 = arith.constant dense<0.000000e+00> : vector<16x128xf32>
    %9 = tpu.matmul %7, %8, %cst_7 {dimension_numbers = #tpu.dot_dimension_numbers<[1], [0], [0], [1], [0, 0, 1, 1], [], []>} : vector<16x128xbf16>, vector<128x128xbf16>, vector<16x128xf32> -> vector<16x128xf32>
    %c0_8 = arith.constant 0 : index
    %c0_9 = arith.constant 0 : index
    %10 = vector.load %arg5[%c0_8, %c0_9] : memref<1x128xf32, #tpu.memory_space<vmem>>, vector<1x128xf32>
    %11 = vector.broadcast %10 : vector<1x128xf32> to vector<16x128xf32>
    %12 = arith.addf %9, %11 : vector<16x128xf32>
    %cst_10 = arith.constant -1.000000e+00 : f32
    %cst_11 = arith.constant 1.000000e+00 : f32
    %13 = vector.broadcast %cst_10 : f32 to vector<16x128xf32>
    %14 = arith.maximumf %13, %12 : vector<16x128xf32>
    %15 = vector.broadcast %cst_11 : f32 to vector<16x128xf32>
    %16 = arith.minimumf %15, %14 : vector<16x128xf32>
    %c0_12 = arith.constant 0 : index
    %c0_13 = arith.constant 0 : index
    %17 = vector.load %arg6[%c0_12, %c0_13] : memref<16x128xf32, #tpu.memory_space<vmem>>, vector<16x128xf32>
    tpu.vector_store %arg6[%c0_12, %c0_13], %16 {strides = array<i32>} : memref<16x128xf32, #tpu.memory_space<vmem>>, vector<16x128xf32>,
    return
  }
  func.func @transform_0(%arg0: i32) -> (i32, i32) {
    %c0_i32 = arith.constant 0 : i32
    %c0_i32_0 = arith.constant 0 : i32
    return %arg0, %c0_i32 : i32, i32
  }
  func.func @transform_1(%arg0: i32) -> (i32, i32) {
    %c0_i32 = arith.constant 0 : i32
    %c0_i32_0 = arith.constant 0 : i32
    %c0_i32_1 = arith.constant 0 : i32
    return %c0_i32, %c0_i32_0 : i32, i32
  }
  func.func @transform_2(%arg0: i32) -> (i32, i32) {
    %c0_i32 = arith.constant 0 : i32
    %c0_i32_0 = arith.constant 0 : i32
    %c0_i32_1 = arith.constant 0 : i32
    return %c0_i32, %c0_i32_0 : i32, i32
  }
  func.func @transform_3(%arg0: i32) -> (i32, i32) {
    %c0_i32 = arith.constant 0 : i32
    %c0_i32_0 = arith.constant 0 : i32
    %c0_i32_1 = arith.constant 0 : i32
    return %c0_i32, %c0_i32_0 : i32, i32
  }
  func.func @transform_4(%arg0: i32) -> (i32, i32) {
    %c0_i32 = arith.constant 0 : i32
    %c0_i32_0 = arith.constant 0 : i32
    %c0_i32_1 = arith.constant 0 : i32
    return %c0_i32, %c0_i32_0 : i32, i32
  }
  func.func @transform_5(%arg0: i32) -> (i32, i32) {
    %c0_i32 = arith.constant 0 : i32
    %c0_i32_0 = arith.constant 0 : i32
    return %arg0, %c0_i32 : i32, i32
  }
}

</mosaic_0001>

<llo_original>
// kernel: tpu_custom_call.1
$region0: #{tpu_custom_call.1}
  #allocation0 [shape = 'u32[]', space=smem, size = 0x4, offset = 0x4, fixed_abs, tag = 'smem constant byte address 0x4 - core index']
  #allocation1 [shape = 'u32[144,128]{1,0:T(1,128)}', space=vmem, size = 0x12000, scoped, tag = 'internal scratch']
  %s0 = inlined_call_operand.hbm [shape: bf16[16,1024], index: 0, kind: input, shape index: {}]
  %s1 = inlined_call_operand.hbm [shape: bf16[1024,128], index: 1, kind: input, shape index: {}]
  %s2 = inlined_call_operand.hbm [shape: f32[1,128], index: 2, kind: input, shape index: {}]
  %s3 = inlined_call_operand.hbm [shape: bf16[128,128], index: 3, kind: input, shape index: {}]
  %s4 = inlined_call_operand.hbm [shape: f32[1,128], index: 4, kind: input, shape index: {}]
  %s5 = inlined_call_operand.hbm [shape: f32[16,128], index: 5, kind: output, shape index: {}]
  %s6 = sld [smem:[#allocation0]]
  $region50: #{tpu_custom_call.1} parent=0
    _
  %s8 = ssub.s32 1, %s6
  %s9 = scalar_select 0, %s8, %s6
  $region1: #{tpu_custom_call.1} parent=0
    #allocation2 [shape = 'u8[32768]{0}', space=vmem, size = 0x8000, scoped, tag = 'input window, operand 0, single buffered']
    #allocation3 [shape = 's32[1]{0}', space=sflag, size = 0x4, scoped, tag = 'scoped memory for tpu_custom_call.1']
    #allocation4 [shape = 's32[1]{0}', space=sflag, size = 0x4, scoped, tag = 'scoped memory for tpu_custom_call.1']
    #allocation5 [shape = 'u8[262144]{0}', space=vmem, size = 0x40000, scoped, tag = 'input window, operand 1, single buffered']
    #allocation6 [shape = 's32[1]{0}', space=sflag, size = 0x4, scoped, tag = 'scoped memory for tpu_custom_call.1']
    #allocation7 [shape = 'u8[512]{0}', space=vmem, size = 0x400, scoped, tag = 'input window, operand 2, single buffered']
    #allocation8 [shape = 'u8[32768]{0}', space=vmem, size = 0x8000, scoped, tag = 'input window, operand 3, single buffered']
    #allocation9 [shape = 's32[1]{0}', space=sflag, size = 0x4, scoped, tag = 'scoped memory for tpu_custom_call.1']
    #allocation10 [shape = 'u8[512]{0}', space=vmem, size = 0x400, scoped, tag = 'input window, operand 4, single buffered']
    #allocation11 [shape = 'u8[8192]{0}', space=vmem, size = 0x2000, scoped, tag = 'output window, operand 0, single buffered']
    %10 = vsyncpa [#allocation3], 0
    %11 = vsyncpa [#allocation6], 0
    %12 = vsyncpa [#allocation9], 0
    %13 = vsyncpa [#allocation4], 0
    // Predicated region
    $region2: #{tpu_custom_call.1} parent=1 // pred_check
      _
    $region3: #{tpu_custom_call.1} parent=1 // pred_check_branch
      %15 = sbr.rel (0) target = $region5
    $region4: #{tpu_custom_call.1} parent=1 // pred_region
      %s17 = ssub.s32 1024, 1024
      %18 = vsyncadd [#allocation3], %s17
      %s19 = sshll.u32 [#allocation2], 4
      %s20 = int_to_ptr.vmem [resolvable:$true] %s19
      %25 = dma.hbm_to_vmem [thread:$0]  %s0, 1024, %s20, [#allocation3], 512, 512, 32
    $region5: #{tpu_custom_call.1} parent=1 // pred_fallthru
      _
    // Predicated region
    $region6: #{tpu_custom_call.1} parent=1 // pred_check
      _
    $region7: #{tpu_custom_call.1} parent=1 // pred_check_branch
      %27 = sbr.rel (0) target = $region9
    $region8: #{tpu_custom_call.1} parent=1 // pred_region
      %s29 = ssub.s32 8192, 8192
      %30 = vsyncadd [#allocation6], %s29
      %s31 = sshll.u32 [#allocation5], 4
      %s32 = int_to_ptr.vmem [resolvable:$true] %s31
      %37 = dma.hbm_to_vmem [thread:$0]  %s1, 8192, %s32, [#allocation6], 64, 64, 4
    $region9: #{tpu_custom_call.1} parent=1 // pred_fallthru
      _
    // Predicated region
    $region10: #{tpu_custom_call.1} parent=1 // pred_check
      _
    $region11: #{tpu_custom_call.1} parent=1 // pred_check_branch
      %39 = sbr.rel (0) target = $region13
    $region12: #{tpu_custom_call.1} parent=1 // pred_region
      %s41 = ssub.s32 16, 16
      %42 = vsyncadd [#allocation6], %s41
      %s44 = sshll.u32 [#allocation7], 4
      %s45 = int_to_ptr.vmem [resolvable:$true] %s44
      %47 = dma.hbm_to_vmem [thread:$0]  %s2, 16, %s45, [#allocation6]
    $region13: #{tpu_custom_call.1} parent=1 // pred_fallthru
      _
    // Predicated region
    $region14: #{tpu_custom_call.1} parent=1 // pred_check
      _
    $region15: #{tpu_custom_call.1} parent=1 // pred_check_branch
      %49 = sbr.rel (0) target = $region17
    $region16: #{tpu_custom_call.1} parent=1 // pred_region
      %s51 = ssub.s32 1024, 1024
      %52 = vsyncadd [#allocation9], %s51
      %s53 = sshll.u32 [#allocation8], 4
      %s54 = int_to_ptr.vmem [resolvable:$true] %s53
      %59 = dma.hbm_to_vmem [thread:$0]  %s3, 1024, %s54, [#allocation9], 64, 64, 4
    $region17: #{tpu_custom_call.1} parent=1 // pred_fallthru
      _
    // Predicated region
    $region18: #{tpu_custom_call.1} parent=1 // pred_check
      _
    $region19: #{tpu_custom_call.1} parent=1 // pred_check_branch
      %61 = sbr.rel (0) target = $region21
    $region20: #{tpu_custom_call.1} parent=1 // pred_region
      %s63 = ssub.s32 16, 16
      %64 = vsyncadd [#allocation9], %s63
      %s66 = sshll.u32 [#allocation10], 4
      %s67 = int_to_ptr.vmem [resolvable:$true] %s66
      %69 = dma.hbm_to_vmem [thread:$0]  %s4, 16, %s67, [#allocation9]
    $region21: #{tpu_custom_call.1} parent=1 // pred_fallthru
      _
    // Predicated region
    $region22: #{tpu_custom_call.1} parent=1 // pred_check
      _
    $region23: #{tpu_custom_call.1} parent=1 // pred_check_branch
      %71 = sbr.rel (0) target = $region25
    $region24: #{tpu_custom_call.1} parent=1 // pred_region
      %72 = dma.done [#allocation3], 1024
    $region25: #{tpu_custom_call.1} parent=1 // pred_fallthru
      _
    // Predicated region
    $region26: #{tpu_custom_call.1} parent=1 // pred_check
      _
    $region27: #{tpu_custom_call.1} parent=1 // pred_check_branch
      %74 = sbr.rel (0) target = $region29
    $region28: #{tpu_custom_call.1} parent=1 // pred_region
      %75 = dma.done [#allocation6], 8192
    $region29: #{tpu_custom_call.1} parent=1 // pred_fallthru
      _
    // Predicated region
    $region30: #{tpu_custom_call.1} parent=1 // pred_check
      _
    $region31: #{tpu_custom_call.1} parent=1 // pred_check_branch
      %77 = sbr.rel (0) target = $region33
    $region32: #{tpu_custom_call.1} parent=1 // pred_region
      %78 = dma.done [#allocation6], 16
    $region33: #{tpu_custom_call.1} parent=1 // pred_fallthru
      _
    // Predicated region
    $region34: #{tpu_custom_call.1} parent=1 // pred_check
      _
    $region35: #{tpu_custom_call.1} parent=1 // pred_check_branch
      %80 = sbr.rel (0) target = $region37
    $region36: #{tpu_custom_call.1} parent=1 // pred_region
      %81 = dma.done [#allocation9], 1024
    $region37: #{tpu_custom_call.1} parent=1 // pred_fallthru
      _
    // Predicated region
    $region38: #{tpu_custom_call.1} parent=1 // pred_check
      _
    $region39: #{tpu_custom_call.1} parent=1 // pred_check_branch
      %83 = sbr.rel (0) target = $region41
    $region40: #{tpu_custom_call.1} parent=1 // pred_region
      %84 = dma.done [#allocation9], 16
    $region41: #{tpu_custom_call.1} parent=1 // pred_fallthru
      _
    %v86 = vld [vmem:[#allocation2] sm:$0xff]
    %v87 = vld [vmem:[#allocation2 + $0x8] sm:$0xff]
    %v88 = vld [vmem:[#allocation2 + $0x10] sm:$0xff]
    %v89 = vld [vmem:[#allocation2 + $0x18] sm:$0xff]
    %v90 = vld [vmem:[#allocation2 + $0x20] sm:$0xff]
    %v91 = vld [vmem:[#allocation2 + $0x28] sm:$0xff]
    %v92 = vld [vmem:[#allocation2 + $0x30] sm:$0xff]
    %v93 = vld [vmem:[#allocation2 + $0x38] sm:$0xff]
    %v94 = vld [vmem:[#allocation5] sm:$0xf]
    %v95 = vld [vmem:[#allocation5 + $0x4] sm:$0xf]
    %v96 = vld [vmem:[#allocation5 + $0x8] sm:$0xf]
    %v97 = vld [vmem:[#allocation5 + $0xc] sm:$0xf]
    %v98 = vld [vmem:[#allocation5 + $0x10] sm:$0xf]
    %v99 = vld [vmem:[#allocation5 + $0x14] sm:$0xf]
    %v100 = vld [vmem:[#allocation5 + $0x18] sm:$0xf]
    %v101 = vld [vmem:[#allocation5 + $0x1c] sm:$0xf]
    %v102 = vld [vmem:[#allocation5 + $0x20] sm:$0xf]
    %v103 = vld [vmem:[#allocation5 + $0x24] sm:$0xf]
    %v104 = vld [vmem:[#allocation5 + $0x28] sm:$0xf]
    %v105 = vld [vmem:[#allocation5 + $0x2c] sm:$0xf]
    %v106 = vld [vmem:[#allocation5 + $0x30] sm:$0xf]
    %v107 = vld [vmem:[#allocation5 + $0x34] sm:$0xf]
    %v108 = vld [vmem:[#allocation5 + $0x38] sm:$0xf]
    %v109 = vld [vmem:[#allocation5 + $0x3c] sm:$0xf]
    %v110 = vld [vmem:[#allocation5 + $0x40] sm:$0xf]
    %v111 = vld [vmem:[#allocation5 + $0x44] sm:$0xf]
    %v112 = vld [vmem:[#allocation5 + $0x48] sm:$0xf]
    %v113 = vld [vmem:[#allocation5 + $0x4c] sm:$0xf]
    %v114 = vld [vmem:[#allocation5 + $0x50] sm:$0xf]
    %v115 = vld [vmem:[#allocation5 + $0x54] sm:$0xf]
    %v116 = vld [vmem:[#allocation5 + $0x58] sm:$0xf]
    %v117 = vld [vmem:[#allocation5 + $0x5c] sm:$0xf]
    %v118 = vld [vmem:[#allocation5 + $0x60] sm:$0xf]
    %v119 = vld [vmem:[#allocation5 + $0x64] sm:$0xf]
    %v120 = vld [vmem:[#allocation5 + $0x68] sm:$0xf]
    %v121 = vld [vmem:[#allocation5 + $0x6c] sm:$0xf]
    %v122 = vld [vmem:[#allocation5 + $0x70] sm:$0xf]
    %v123 = vld [vmem:[#allocation5 + $0x74] sm:$0xf]
    %v124 = vld [vmem:[#allocation5 + $0x78] sm:$0xf]
    %v125 = vld [vmem:[#allocation5 + $0x7c] sm:$0xf]
    %v126 = vld [vmem:[#allocation5 + $0x80] sm:$0xf]
    %v127 = vld [vmem:[#allocation5 + $0x84] sm:$0xf]
    %v128 = vld [vmem:[#allocation5 + $0x88] sm:$0xf]
    %v129 = vld [vmem:[#allocation5 + $0x8c] sm:$0xf]
    %v130 = vld [vmem:[#allocation5 + $0x90] sm:$0xf]
    %v131 = vld [vmem:[#allocation5 + $0x94] sm:$0xf]
    %v132 = vld [vmem:[#allocation5 + $0x98] sm:$0xf]
    %v133 = vld [vmem:[#allocation5 + $0x9c] sm:$0xf]
    %v134 = vld [vmem:[#allocation5 + $0xa0] sm:$0xf]
    %v135 = vld [vmem:[#allocation5 + $0xa4] sm:$0xf]
    %v136 = vld [vmem:[#allocation5 + $0xa8] sm:$0xf]
    %v137 = vld [vmem:[#allocation5 + $0xac] sm:$0xf]
    %v138 = vld [vmem:[#allocation5 + $0xb0] sm:$0xf]
    %v139 = vld [vmem:[#allocation5 + $0xb4] sm:$0xf]
    %v140 = vld [vmem:[#allocation5 + $0xb8] sm:$0xf]
    %v141 = vld [vmem:[#allocation5 + $0xbc] sm:$0xf]
    %v142 = vld [vmem:[#allocation5 + $0xc0] sm:$0xf]
    %v143 = vld [vmem:[#allocation5 + $0xc4] sm:$0xf]
    %v144 = vld [vmem:[#allocation5 + $0xc8] sm:$0xf]
    %v145 = vld [vmem:[#allocation5 + $0xcc] sm:$0xf]
    %v146 = vld [vmem:[#allocation5 + $0xd0] sm:$0xf]
    %v147 = vld [vmem:[#allocation5 + $0xd4] sm:$0xf]
    %v148 = vld [vmem:[#allocation5 + $0xd8] sm:$0xf]
    %v149 = vld [vmem:[#allocation5 + $0xdc] sm:$0xf]
    %v150 = vld [vmem:[#allocation5 + $0xe0] sm:$0xf]
    %v151 = vld [vmem:[#allocation5 + $0xe4] sm:$0xf]
    %v152 = vld [vmem:[#allocation5 + $0xe8] sm:$0xf]
    %v153 = vld [vmem:[#allocation5 + $0xec] sm:$0xf]
    %v154 = vld [vmem:[#allocation5 + $0xf0] sm:$0xf]
    %v155 = vld [vmem:[#allocation5 + $0xf4] sm:$0xf]
    %v156 = vld [vmem:[#allocation5 + $0xf8] sm:$0xf]
    %v157 = vld [vmem:[#allocation5 + $0xfc] sm:$0xf]
    %v158 = vld [vmem:[#allocation5 + $0x100] sm:$0xf]
    %v159 = vld [vmem:[#allocation5 + $0x104] sm:$0xf]
    %v160 = vld [vmem:[#allocation5 + $0x108] sm:$0xf]
    %v161 = vld [vmem:[#allocation5 + $0x10c] sm:$0xf]
    %v162 = vld [vmem:[#allocation5 + $0x110] sm:$0xf]
    %v163 = vld [vmem:[#allocation5 + $0x114] sm:$0xf]
    %v164 = vld [vmem:[#allocation5 + $0x118] sm:$0xf]
    %v165 = vld [vmem:[#allocation5 + $0x11c] sm:$0xf]
    %v166 = vld [vmem:[#allocation5 + $0x120] sm:$0xf]
    %v167 = vld [vmem:[#allocation5 + $0x124] sm:$0xf]
    %v168 = vld [vmem:[#allocation5 + $0x128] sm:$0xf]
    %v169 = vld [vmem:[#allocation5 + $0x12c] sm:$0xf]
    %v170 = vld [vmem:[#allocation5 + $0x130] sm:$0xf]
    %v171 = vld [vmem:[#allocation5 + $0x134] sm:$0xf]
    %v172 = vld [vmem:[#allocation5 + $0x138] sm:$0xf]
    %v173 = vld [vmem:[#allocation5 + $0x13c] sm:$0xf]
    %v174 = vld [vmem:[#allocation5 + $0x140] sm:$0xf]
    %v175 = vld [vmem:[#allocation5 + $0x144] sm:$0xf]
    %v176 = vld [vmem:[#allocation5 + $0x148] sm:$0xf]
    %v177 = vld [vmem:[#allocation5 + $0x14c] sm:$0xf]
    %v178 = vld [vmem:[#allocation5 + $0x150] sm:$0xf]
    %v179 = vld [vmem:[#allocation5 + $0x154] sm:$0xf]
    %v180 = vld [vmem:[#allocation5 + $0x158] sm:$0xf]
    %v181 = vld [vmem:[#allocation5 + $0x15c] sm:$0xf]
    %v182 = vld [vmem:[#allocation5 + $0x160] sm:$0xf]
    %v183 = vld [vmem:[#allocation5 + $0x164] sm:$0xf]
    %v184 = vld [vmem:[#allocation5 + $0x168] sm:$0xf]
    %v185 = vld [vmem:[#allocation5 + $0x16c] sm:$0xf]
    %v186 = vld [vmem:[#allocation5 + $0x170] sm:$0xf]
    %v187 = vld [vmem:[#allocation5 + $0x174] sm:$0xf]
    %v188 = vld [vmem:[#allocation5 + $0x178] sm:$0xf]
    %v189 = vld [vmem:[#allocation5 + $0x17c] sm:$0xf]
    %v190 = vld [vmem:[#allocation5 + $0x180] sm:$0xf]
    %v191 = vld [vmem:[#allocation5 + $0x184] sm:$0xf]
    %v192 = vld [vmem:[#allocation5 + $0x188] sm:$0xf]
    %v193 = vld [vmem:[#allocation5 + $0x18c] sm:$0xf]
    %v194 = vld [vmem:[#allocation5 + $0x190] sm:$0xf]
    %v195 = vld [vmem:[#allocation5 + $0x194] sm:$0xf]
    %v196 = vld [vmem:[#allocation5 + $0x198] sm:$0xf]
    %v197 = vld [vmem:[#allocation5 + $0x19c] sm:$0xf]
    %v198 = vld [vmem:[#allocation5 + $0x1a0] sm:$0xf]
    %v199 = vld [vmem:[#allocation5 + $0x1a4] sm:$0xf]
    %v200 = vld [vmem:[#allocation5 + $0x1a8] sm:$0xf]
    %v201 = vld [vmem:[#allocation5 + $0x1ac] sm:$0xf]
    %v202 = vld [vmem:[#allocation5 + $0x1b0] sm:$0xf]
    %v203 = vld [vmem:[#allocation5 + $0x1b4] sm:$0xf]
    %v204 = vld [vmem:[#allocation5 + $0x1b8] sm:$0xf]
    %v205 = vld [vmem:[#allocation5 + $0x1bc] sm:$0xf]
    %v206 = vld [vmem:[#allocation5 + $0x1c0] sm:$0xf]
    %v207 = vld [vmem:[#allocation5 + $0x1c4] sm:$0xf]
    %v208 = vld [vmem:[#allocation5 + $0x1c8] sm:$0xf]
    %v209 = vld [vmem:[#allocation5 + $0x1cc] sm:$0xf]
    %v210 = vld [vmem:[#allocation5 + $0x1d0] sm:$0xf]
    %v211 = vld [vmem:[#allocation5 + $0x1d4] sm:$0xf]
    %v212 = vld [vmem:[#allocation5 + $0x1d8] sm:$0xf]
    %v213 = vld [vmem:[#allocation5 + $0x1dc] sm:$0xf]
    %v214 = vld [vmem:[#allocation5 + $0x1e0] sm:$0xf]
    %v215 = vld [vmem:[#allocation5 + $0x1e4] sm:$0xf]
    %v216 = vld [vmem:[#allocation5 + $0x1e8] sm:$0xf]
    %v217 = vld [vmem:[#allocation5 + $0x1ec] sm:$0xf]
    %v218 = vld [vmem:[#allocation5 + $0x1f0] sm:$0xf]
    %v219 = vld [vmem:[#allocation5 + $0x1f4] sm:$0xf]
    %v220 = vld [vmem:[#allocation5 + $0x1f8] sm:$0xf]
    %v221 = vld [vmem:[#allocation5 + $0x1fc] sm:$0xf]
    %v222 = vld [vmem:[#allocation7] sm:$0x1]
    %v224 = vlaneseq
    %v225 = vshrl.u32 %v224, 7
    %v226 = vsub.s32 0, %v225
    %v227 = vrot.slane %v222, %v226
    %v237 = vunpack.c.l.b16 %v86
    %v238 = vunpack.c.h.b16 %v86
    %v239 = vunpack.c.l.b16 %v87
    %v240 = vunpack.c.h.b16 %v87
    %v241 = vunpack.c.l.b16 %v88
    %v242 = vunpack.c.h.b16 %v88
    %v243 = vunpack.c.l.b16 %v89
    %v244 = vunpack.c.h.b16 %v89
    %v245 = vunpack.c.l.b16 %v90
    %v246 = vunpack.c.h.b16 %v90
    %v247 = vunpack.c.l.b16 %v91
    %v248 = vunpack.c.h.b16 %v91
    %v249 = vunpack.c.l.b16 %v92
    %v250 = vunpack.c.h.b16 %v92
    %v251 = vunpack.c.l.b16 %v93
    %v252 = vunpack.c.h.b16 %v93
    %v253 = vpack.c.b16 %v245, %v237
    %v254 = vpack.c.b16 %v246, %v238
    %v255 = vpack.c.b16 %v247, %v239
    %v256 = vpack.c.b16 %v248, %v240
    %v257 = vpack.c.b16 %v249, %v241
    %v258 = vpack.c.b16 %v250, %v242
    %v259 = vpack.c.b16 %v251, %v243
    %v260 = vpack.c.b16 %v252, %v244
    %v397 = vunpack.c.l.b16 %v94
    %v398 = vunpack.c.l.b16 %v95
    %v399 = vunpack.c.l.b16 %v96
    %v400 = vunpack.c.l.b16 %v97
    %v401 = vunpack.c.l.b16 %v98
    %v402 = vunpack.c.l.b16 %v99
    %v403 = vunpack.c.l.b16 %v100
    %v404 = vunpack.c.l.b16 %v101
    %v405 = vunpack.c.l.b16 %v102
    %v406 = vunpack.c.l.b16 %v103
    %v407 = vunpack.c.l.b16 %v104
    %v408 = vunpack.c.l.b16 %v105
    %v409 = vunpack.c.l.b16 %v106
    %v410 = vunpack.c.l.b16 %v107
    %v411 = vunpack.c.l.b16 %v108
    %v412 = vunpack.c.l.b16 %v109
    %v413 = vunpack.c.l.b16 %v110
    %v414 = vunpack.c.l.b16 %v111
    %v415 = vunpack.c.l.b16 %v112
    %v416 = vunpack.c.l.b16 %v113
    %v417 = vunpack.c.l.b16 %v114
    %v418 = vunpack.c.l.b16 %v115
    %v419 = vunpack.c.l.b16 %v116
    %v420 = vunpack.c.l.b16 %v117
    %v421 = vunpack.c.l.b16 %v118
    %v422 = vunpack.c.l.b16 %v119
    %v423 = vunpack.c.l.b16 %v120
    %v424 = vunpack.c.l.b16 %v121
    %v425 = vunpack.c.l.b16 %v122
    %v426 = vunpack.c.l.b16 %v123
    %v427 = vunpack.c.l.b16 %v124
    %v428 = vunpack.c.l.b16 %v125
    %v429 = vunpack.c.l.b16 %v126
    %v430 = vunpack.c.l.b16 %v127
    %v431 = vunpack.c.l.b16 %v128
    %v432 = vunpack.c.l.b16 %v129
    %v433 = vunpack.c.l.b16 %v130
    %v434 = vunpack.c.l.b16 %v131
    %v435 = vunpack.c.l.b16 %v132
    %v436 = vunpack.c.l.b16 %v133
    %v437 = vunpack.c.l.b16 %v134
    %v438 = vunpack.c.l.b16 %v135
    %v439 = vunpack.c.l.b16 %v136
    %v440 = vunpack.c.l.b16 %v137
    %v441 = vunpack.c.l.b16 %v138
    %v442 = vunpack.c.l.b16 %v139
    %v443 = vunpack.c.l.b16 %v140
    %v444 = vunpack.c.l.b16 %v141
    %v445 = vunpack.c.l.b16 %v142
    %v446 = vunpack.c.l.b16 %v143
    %v447 = vunpack.c.l.b16 %v144
    %v448 = vunpack.c.l.b16 %v145
    %v449 = vunpack.c.l.b16 %v146
    %v450 = vunpack.c.l.b16 %v147
    %v451 = vunpack.c.l.b16 %v148
    %v452 = vunpack.c.l.b16 %v149
    %v453 = vunpack.c.l.b16 %v150
    %v454 = vunpack.c.l.b16 %v151
    %v455 = vunpack.c.l.b16 %v152
    %v456 = vunpack.c.l.b16 %v153
    %v457 = vunpack.c.l.b16 %v154
    %v458 = vunpack.c.l.b16 %v155
    %v459 = vunpack.c.l.b16 %v156
    %v460 = vunpack.c.l.b16 %v157
    %v461 = vunpack.c.l.b16 %v158
    %v462 = vunpack.c.l.b16 %v159
    %v463 = vunpack.c.l.b16 %v160
    %v464 = vunpack.c.l.b16 %v161
    %v465 = vunpack.c.l.b16 %v162
    %v466 = vunpack.c.l.b16 %v163
    %v467 = vunpack.c.l.b16 %v164
    %v468 = vunpack.c.l.b16 %v165
    %v469 = vunpack.c.l.b16 %v166
    %v470 = vunpack.c.l.b16 %v167
    %v471 = vunpack.c.l.b16 %v168
    %v472 = vunpack.c.l.b16 %v169
    %v473 = vunpack.c.l.b16 %v170
    %v474 = vunpack.c.l.b16 %v171
    %v475 = vunpack.c.l.b16 %v172
    %v476 = vunpack.c.l.b16 %v173
    %v477 = vunpack.c.l.b16 %v174
    %v478 = vunpack.c.l.b16 %v175
    %v479 = vunpack.c.l.b16 %v176
    %v480 = vunpack.c.l.b16 %v177
    %v481 = vunpack.c.l.b16 %v178
    %v482 = vunpack.c.l.b16 %v179
    %v483 = vunpack.c.l.b16 %v180
    %v484 = vunpack.c.l.b16 %v181
    %v485 = vunpack.c.l.b16 %v182
    %v486 = vunpack.c.l.b16 %v183
    %v487 = vunpack.c.l.b16 %v184
    %v488 = vunpack.c.l.b16 %v185
    %v489 = vunpack.c.l.b16 %v186
    %v490 = vunpack.c.l.b16 %v187
    %v491 = vunpack.c.l.b16 %v188
    %v492 = vunpack.c.l.b16 %v189
    %v493 = vunpack.c.l.b16 %v190
    %v494 = vunpack.c.l.b16 %v191
    %v495 = vunpack.c.l.b16 %v192
    %v496 = vunpack.c.l.b16 %v193
    %v497 = vunpack.c.l.b16 %v194
    %v498 = vunpack.c.l.b16 %v195
    %v499 = vunpack.c.l.b16 %v196
    %v500 = vunpack.c.l.b16 %v197
    %v501 = vunpack.c.l.b16 %v198
    %v502 = vunpack.c.l.b16 %v199
    %v503 = vunpack.c.l.b16 %v200
    %v504 = vunpack.c.l.b16 %v201
    %v505 = vunpack.c.l.b16 %v202
    %v506 = vunpack.c.l.b16 %v203
    %v507 = vunpack.c.l.b16 %v204
    %v508 = vunpack.c.l.b16 %v205
    %v509 = vunpack.c.l.b16 %v206
    %v510 = vunpack.c.l.b16 %v207
    %v511 = vunpack.c.l.b16 %v208
    %v512 = vunpack.c.l.b16 %v209
    %v513 = vunpack.c.l.b16 %v210
    %v514 = vunpack.c.l.b16 %v211
    %v515 = vunpack.c.l.b16 %v212
    %v516 = vunpack.c.l.b16 %v213
    %v517 = vunpack.c.l.b16 %v214
    %v518 = vunpack.c.l.b16 %v215
    %v519 = vunpack.c.l.b16 %v216
    %v520 = vunpack.c.l.b16 %v217
    %v521 = vunpack.c.l.b16 %v218
    %v522 = vunpack.c.l.b16 %v219
    %v523 = vunpack.c.l.b16 %v220
    %v524 = vunpack.c.l.b16 %v221
    %v525 = vpack.c.b16 %v398, %v397
    %v526 = vpack.c.b16 %v400, %v399
    %v527 = vpack.c.b16 %v402, %v401
    %v528 = vpack.c.b16 %v404, %v403
    %v529 = vpack.c.b16 %v406, %v405
    %v530 = vpack.c.b16 %v408, %v407
    %v531 = vpack.c.b16 %v410, %v409
    %v532 = vpack.c.b16 %v412, %v411
    %v533 = vpack.c.b16 %v414, %v413
    %v534 = vpack.c.b16 %v416, %v415
    %v535 = vpack.c.b16 %v418, %v417
    %v536 = vpack.c.b16 %v420, %v419
    %v537 = vpack.c.b16 %v422, %v421
    %v538 = vpack.c.b16 %v424, %v423
    %v539 = vpack.c.b16 %v426, %v425
    %v540 = vpack.c.b16 %v428, %v427
    %v541 = vpack.c.b16 %v430, %v429
    %v542 = vpack.c.b16 %v432, %v431
    %v543 = vpack.c.b16 %v434, %v433
    %v544 = vpack.c.b16 %v436, %v435
    %v545 = vpack.c.b16 %v438, %v437
    %v546 = vpack.c.b16 %v440, %v439
    %v547 = vpack.c.b16 %v442, %v441
    %v548 = vpack.c.b16 %v444, %v443
    %v549 = vpack.c.b16 %v446, %v445
    %v550 = vpack.c.b16 %v448, %v447
    %v551 = vpack.c.b16 %v450, %v449
    %v552 = vpack.c.b16 %v452, %v451
    %v553 = vpack.c.b16 %v454, %v453
    %v554 = vpack.c.b16 %v456, %v455
    %v555 = vpack.c.b16 %v458, %v457
    %v556 = vpack.c.b16 %v460, %v459
    %v557 = vpack.c.b16 %v462, %v461
    %v558 = vpack.c.b16 %v464, %v463
    %v559 = vpack.c.b16 %v466, %v465
    %v560 = vpack.c.b16 %v468, %v467
    %v561 = vpack.c.b16 %v470, %v469
    %v562 = vpack.c.b16 %v472, %v471
    %v563 = vpack.c.b16 %v474, %v473
    %v564 = vpack.c.b16 %v476, %v475
    %v565 = vpack.c.b16 %v478, %v477
    %v566 = vpack.c.b16 %v480, %v479
    %v567 = vpack.c.b16 %v482, %v481
    %v568 = vpack.c.b16 %v484, %v483
    %v569 = vpack.c.b16 %v486, %v485
    %v570 = vpack.c.b16 %v488, %v487
    %v571 = vpack.c.b16 %v490, %v489
    %v572 = vpack.c.b16 %v492, %v491
    %v573 = vpack.c.b16 %v494, %v493
    %v574 = vpack.c.b16 %v496, %v495
    %v575 = vpack.c.b16 %v498, %v497
    %v576 = vpack.c.b16 %v500, %v499
    %v577 = vpack.c.b16 %v502, %v501
    %v578 = vpack.c.b16 %v504, %v503
    %v579 = vpack.c.b16 %v506, %v505
    %v580 = vpack.c.b16 %v508, %v507
    %v581 = vpack.c.b16 %v510, %v509
    %v582 = vpack.c.b16 %v512, %v511
    %v583 = vpack.c.b16 %v514, %v513
    %v584 = vpack.c.b16 %v516, %v515
    %v585 = vpack.c.b16 %v518, %v517
    %v586 = vpack.c.b16 %v520, %v519
    %v587 = vpack.c.b16 %v522, %v521
    %v588 = vpack.c.b16 %v524, %v523
    %653 = vmatprep.subr.bf16.mxu0 0
    %654 = vmatpush1.bf16.msra.mxu0 %v525
    %655 = vmatprep.subr.bf16.mxu0 0
    %656 = vmatpush1.bf16.msra.mxu0 %v526
    %657 = vmatprep.subr.bf16.mxu0 0
    %658 = vmatpush1.bf16.msra.mxu0 %v527
    %659 = vmatprep.subr.bf16.mxu0 0
    %660 = vmatpush1.bf16.msra.mxu0 %v528
    %661 = vmatprep.subr.bf16.mxu0 0
    %662 = vmatpush1.bf16.msra.mxu0 %v529
    %663 = vmatprep.subr.bf16.mxu0 0
    %664 = vmatpush1.bf16.msra.mxu0 %v530
    %665 = vmatprep.subr.bf16.mxu0 0
    %666 = vmatpush1.bf16.msra.mxu0 %v531
    %667 = vmatprep.subr.bf16.mxu0 0
    %668 = vmatpush1.bf16.msra.mxu0 %v532
    %669 = vmatprep.subr.bf16.mxu0 0
    %670 = vmatpush1.bf16.msra.mxu0 %v533
    %671 = vmatprep.subr.bf16.mxu0 0
    %672 = vmatpush1.bf16.msra.mxu0 %v534
    %673 = vmatprep.subr.bf16.mxu0 0
    %674 = vmatpush1.bf16.msra.mxu0 %v535
    %675 = vmatprep.subr.bf16.mxu0 0
    %676 = vmatpush1.bf16.msra.mxu0 %v536
    %677 = vmatprep.subr.bf16.mxu0 0
    %678 = vmatpush1.bf16.msra.mxu0 %v537
    %679 = vmatprep.subr.bf16.mxu0 0
    %680 = vmatpush1.bf16.msra.mxu0 %v538
    %681 = vmatprep.subr.bf16.mxu0 0
    %682 = vmatpush1.bf16.msra.mxu0 %v539
    %683 = vmatprep.subr.bf16.mxu0 0
    %684 = vmatpush1.bf16.msra.mxu0 %v540
    %685 = vmatprep.mubr.bf16.mxu0 %v254
    %686 = vmatmul.mubr.bf16.gmra.mrb[0].mxu0 %v253
    %v687 = vpop.f32.mrb[0].mxu0
    %v688 = vadd.f32 %v227, %v687
    %v689 = vpop.f32.mrb[0].mxu0
    %v690 = vpop.f32.mrb[0].mxu0
    %v691 = vadd.f32 %v227, %v690
    %v692 = vpop.f32.mrb[0].mxu0
    %693 = vdwg.mxu0
    %694 = vmatprep.subr.bf16.mxu0 0
    %695 = vmatpush1.bf16.msra.mxu0 %v541
    %696 = vmatprep.subr.bf16.mxu0 0
    %697 = vmatpush1.bf16.msra.mxu0 %v542
    %698 = vmatprep.subr.bf16.mxu0 0
    %699 = vmatpush1.bf16.msra.mxu0 %v543
    %700 = vmatprep.subr.bf16.mxu0 0
    %701 = vmatpush1.bf16.msra.mxu0 %v544
    %702 = vmatprep.subr.bf16.mxu0 0
    %703 = vmatpush1.bf16.msra.mxu0 %v545
    %704 = vmatprep.subr.bf16.mxu0 0
    %705 = vmatpush1.bf16.msra.mxu0 %v546
    %706 = vmatprep.subr.bf16.mxu0 0
    %707 = vmatpush1.bf16.msra.mxu0 %v547
    %708 = vmatprep.subr.bf16.mxu0 0
    %709 = vmatpush1.bf16.msra.mxu0 %v548
    %710 = vmatprep.subr.bf16.mxu0 0
    %711 = vmatpush1.bf16.msra.mxu0 %v549
    %712 = vmatprep.subr.bf16.mxu0 0
    %713 = vmatpush1.bf16.msra.mxu0 %v550
    %714 = vmatprep.subr.bf16.mxu0 0
    %715 = vmatpush1.bf16.msra.mxu0 %v551
    %716 = vmatprep.subr.bf16.mxu0 0
    %717 = vmatpush1.bf16.msra.mxu0 %v552
    %718 = vmatprep.subr.bf16.mxu0 0
    %719 = vmatpush1.bf16.msra.mxu0 %v553
    %720 = vmatprep.subr.bf16.mxu0 0
    %721 = vmatpush1.bf16.msra.mxu0 %v554
    %722 = vmatprep.subr.bf16.mxu0 0
    %723 = vmatpush1.bf16.msra.mxu0 %v555
    %724 = vmatprep.subr.bf16.mxu0 0
    %725 = vmatpush1.bf16.msra.mxu0 %v556
    %726 = vmatprep.mubr.bf16.mxu0 %v256
    %727 = vmatmul.mubr.bf16.gmra.mrb[0].mxu0 %v255
    %v728 = vpop.f32.mrb[0].mxu0
    %v729 = vadd.f32 %v688, %v728
    %v730 = vpop.f32.mrb[0].mxu0
    %v731 = vpop.f32.mrb[0].mxu0
    %v732 = vadd.f32 %v691, %v731
    %v733 = vpop.f32.mrb[0].mxu0
    %734 = vdwg.mxu0
    %735 = vmatprep.subr.bf16.mxu0 0
    %736 = vmatpush1.bf16.msra.mxu0 %v557
    %737 = vmatprep.subr.bf16.mxu0 0
    %738 = vmatpush1.bf16.msra.mxu0 %v558
    %739 = vmatprep.subr.bf16.mxu0 0
    %740 = vmatpush1.bf16.msra.mxu0 %v559
    %741 = vmatprep.subr.bf16.mxu0 0
    %742 = vmatpush1.bf16.msra.mxu0 %v560
    %743 = vmatprep.subr.bf16.mxu0 0
    %744 = vmatpush1.bf16.msra.mxu0 %v561
    %745 = vmatprep.subr.bf16.mxu0 0
    %746 = vmatpush1.bf16.msra.mxu0 %v562
    %747 = vmatprep.subr.bf16.mxu0 0
    %748 = vmatpush1.bf16.msra.mxu0 %v563
    %749 = vmatprep.subr.bf16.mxu0 0
    %750 = vmatpush1.bf16.msra.mxu0 %v564
    %751 = vmatprep.subr.bf16.mxu0 0
    %752 = vmatpush1.bf16.msra.mxu0 %v565
    %753 = vmatprep.subr.bf16.mxu0 0
    %754 = vmatpush1.bf16.msra.mxu0 %v566
    %755 = vmatprep.subr.bf16.mxu0 0
    %756 = vmatpush1.bf16.msra.mxu0 %v567
    %757 = vmatprep.subr.bf16.mxu0 0
    %758 = vmatpush1.bf16.msra.mxu0 %v568
    %759 = vmatprep.subr.bf16.mxu0 0
    %760 = vmatpush1.bf16.msra.mxu0 %v569
    %761 = vmatprep.subr.bf16.mxu0 0
    %762 = vmatpush1.bf16.msra.mxu0 %v570
    %763 = vmatprep.subr.bf16.mxu0 0
    %764 = vmatpush1.bf16.msra.mxu0 %v571
    %765 = vmatprep.subr.bf16.mxu0 0
    %766 = vmatpush1.bf16.msra.mxu0 %v572
    %767 = vmatprep.mubr.bf16.mxu0 %v258
    %768 = vmatmul.mubr.bf16.gmra.mrb[0].mxu0 %v257
    %v769 = vpop.f32.mrb[0].mxu0
    %v770 = vadd.f32 %v729, %v769
    %v771 = vpop.f32.mrb[0].mxu0
    %v772 = vpop.f32.mrb[0].mxu0
    %v773 = vadd.f32 %v732, %v772
    %v774 = vpop.f32.mrb[0].mxu0
    %775 = vdwg.mxu0
    %776 = vmatprep.subr.bf16.mxu0 0
    %777 = vmatpush1.bf16.msra.mxu0 %v573
    %778 = vmatprep.subr.bf16.mxu0 0
    %779 = vmatpush1.bf16.msra.mxu0 %v574
    %780 = vmatprep.subr.bf16.mxu0 0
    %781 = vmatpush1.bf16.msra.mxu0 %v575
    %782 = vmatprep.subr.bf16.mxu0 0
    %783 = vmatpush1.bf16.msra.mxu0 %v576
    %784 = vmatprep.subr.bf16.mxu0 0
    %785 = vmatpush1.bf16.msra.mxu0 %v577
    %786 = vmatprep.subr.bf16.mxu0 0
    %787 = vmatpush1.bf16.msra.mxu0 %v578
    %788 = vmatprep.subr.bf16.mxu0 0
    %789 = vmatpush1.bf16.msra.mxu0 %v579
    %790 = vmatprep.subr.bf16.mxu0 0
    %791 = vmatpush1.bf16.msra.mxu0 %v580
    %792 = vmatprep.subr.bf16.mxu0 0
    %793 = vmatpush1.bf16.msra.mxu0 %v581
    %794 = vmatprep.subr.bf16.mxu0 0
    %795 = vmatpush1.bf16.msra.mxu0 %v582
    %796 = vmatprep.subr.bf16.mxu0 0
    %797 = vmatpush1.bf16.msra.mxu0 %v583
    %798 = vmatprep.subr.bf16.mxu0 0
    %799 = vmatpush1.bf16.msra.mxu0 %v584
    %800 = vmatprep.subr.bf16.mxu0 0
    %801 = vmatpush1.bf16.msra.mxu0 %v585
    %802 = vmatprep.subr.bf16.mxu0 0
    %803 = vmatpush1.bf16.msra.mxu0 %v586
    %804 = vmatprep.subr.bf16.mxu0 0
    %805 = vmatpush1.bf16.msra.mxu0 %v587
    %806 = vmatprep.subr.bf16.mxu0 0
    %807 = vmatpush1.bf16.msra.mxu0 %v588
    %808 = vmatprep.mubr.bf16.mxu0 %v260
    %809 = vmatmul.mubr.bf16.gmra.mrb[0].mxu0 %v259
    %v810 = vpop.f32.mrb[0].mxu0
    %v811 = vadd.f32 %v770, %v810
    %v812 = vpop.f32.mrb[0].mxu0
    %v813 = vpop.f32.mrb[0].mxu0
    %v814 = vadd.f32 %v773, %v813
    %v815 = vpop.f32.mrb[0].mxu0
    %816 = vdwg.mxu0
    %v817 = vtanh.pop %v811
    %v818 = vtanh.pop %v814
    %v819 = vpack.c.bf16 %v818, %v817
    %v820 = vld [vmem:[#allocation8] sm:$0xf]
    %v821 = vld [vmem:[#allocation8 + $0x4] sm:$0xf]
    %v822 = vld [vmem:[#allocation8 + $0x8] sm:$0xf]
    %v823 = vld [vmem:[#allocation8 + $0xc] sm:$0xf]
    %v824 = vld [vmem:[#allocation8 + $0x10] sm:$0xf]
    %v825 = vld [vmem:[#allocation8 + $0x14] sm:$0xf]
    %v826 = vld [vmem:[#allocation8 + $0x18] sm:$0xf]
    %v827 = vld [vmem:[#allocation8 + $0x1c] sm:$0xf]
    %v828 = vld [vmem:[#allocation8 + $0x20] sm:$0xf]
    %v829 = vld [vmem:[#allocation8 + $0x24] sm:$0xf]
    %v830 = vld [vmem:[#allocation8 + $0x28] sm:$0xf]
    %v831 = vld [vmem:[#allocation8 + $0x2c] sm:$0xf]
    %v832 = vld [vmem:[#allocation8 + $0x30] sm:$0xf]
    %v833 = vld [vmem:[#allocation8 + $0x34] sm:$0xf]
    %v834 = vld [vmem:[#allocation8 + $0x38] sm:$0xf]
    %v835 = vld [vmem:[#allocation8 + $0x3c] sm:$0xf]
    %v836 = vld [vmem:[#allocation10] sm:$0x1]
    %v838 = vlaneseq
    %v839 = vshrl.u32 %v838, 7
    %v840 = vsub.s32 0, %v839
    %v841 = vrot.slane %v836, %v840
    %v859 = vunpack.c.l.b16 %v820
    %v860 = vunpack.c.l.b16 %v821
    %v861 = vunpack.c.l.b16 %v822
    %v862 = vunpack.c.l.b16 %v823
    %v863 = vunpack.c.l.b16 %v824
    %v864 = vunpack.c.l.b16 %v825
    %v865 = vunpack.c.l.b16 %v826
    %v866 = vunpack.c.l.b16 %v827
    %v867 = vunpack.c.l.b16 %v828
    %v868 = vunpack.c.l.b16 %v829
    %v869 = vunpack.c.l.b16 %v830
    %v870 = vunpack.c.l.b16 %v831
    %v871 = vunpack.c.l.b16 %v832
    %v872 = vunpack.c.l.b16 %v833
    %v873 = vunpack.c.l.b16 %v834
    %v874 = vunpack.c.l.b16 %v835
    %v875 = vpack.c.b16 %v860, %v859
    %v876 = vpack.c.b16 %v862, %v861
    %v877 = vpack.c.b16 %v864, %v863
    %v878 = vpack.c.b16 %v866, %v865
    %v879 = vpack.c.b16 %v868, %v867
    %v880 = vpack.c.b16 %v870, %v869
    %v881 = vpack.c.b16 %v872, %v871
    %v882 = vpack.c.b16 %v874, %v873
    %891 = vmatprep.subr.bf16.mxu0 0
    %892 = vmatpush1.bf16.msra.mxu0 %v875
    %893 = vmatprep.subr.bf16.mxu0 0
    %894 = vmatpush1.bf16.msra.mxu0 %v876
    %895 = vmatprep.subr.bf16.mxu0 0
    %896 = vmatpush1.bf16.msra.mxu0 %v877
    %897 = vmatprep.subr.bf16.mxu0 0
    %898 = vmatpush1.bf16.msra.mxu0 %v878
    %899 = vmatprep.subr.bf16.mxu0 0
    %900 = vmatpush1.bf16.msra.mxu0 %v879
    %901 = vmatprep.subr.bf16.mxu0 0
    %902 = vmatpush1.bf16.msra.mxu0 %v880
    %903 = vmatprep.subr.bf16.mxu0 0
    %904 = vmatpush1.bf16.msra.mxu0 %v881
    %905 = vmatprep.subr.bf16.mxu0 0
    %906 = vmatpush1.bf16.msra.mxu0 %v882
    %907 = vmatprep.subr.bf16.mxu0 0
    %908 = vmatpush1.bf16.msra.mxu0 0
    %909 = vmatprep.subr.bf16.mxu0 0
    %910 = vmatpush1.bf16.msra.mxu0 0
    %911 = vmatprep.subr.bf16.mxu0 0
    %912 = vmatpush1.bf16.msra.mxu0 0
    %913 = vmatprep.subr.bf16.mxu0 0
    %914 = vmatpush1.bf16.msra.mxu0 0
    %915 = vmatprep.subr.bf16.mxu0 0
    %916 = vmatpush1.bf16.msra.mxu0 0
    %917 = vmatprep.subr.bf16.mxu0 0
    %918 = vmatpush1.bf16.msra.mxu0 0
    %919 = vmatprep.subr.bf16.mxu0 0
    %920 = vmatpush1.bf16.msra.mxu0 0
    %921 = vmatprep.subr.bf16.mxu0 0
    %922 = vmatpush1.bf16.msra.mxu0 0
    %923 = vmatprep.mubr.bf16.mxu0 0
    %924 = vmatmul.mubr.bf16.gmra.mrb[0].mxu0 %v819
    %v925 = vpop.f32.mrb[0].mxu0
    %v926 = vadd.f32 %v841, %v925
    %v927 = vpop.f32.mrb[0].mxu0
    %v928 = vpop.f32.mrb[0].mxu0
    %v929 = vadd.f32 %v841, %v928
    %v930 = vpop.f32.mrb[0].mxu0
    %931 = vdwg.mxu0
    %v932 = vmax.f32 %v926, -1.0
    %v933 = vmax.f32 %v929, -1.0
    %v934 = vmin.f32 %v932, 1.0
    %v935 = vmin.f32 %v933, 1.0
    %936 = vst [vmem:[#allocation11] sm:$0xff] %v934
    %937 = vst [vmem:[#allocation11 + $0x8] sm:$0xff] %v935
    // Predicated region
    $region42: #{tpu_custom_call.1} parent=1 // pred_check
      _
    $region43: #{tpu_custom_call.1} parent=1 // pred_check_branch
      %939 = sbr.rel (0) target = $region45
    $region44: #{tpu_custom_call.1} parent=1 // pred_region
      %s941 = ssub.s32 256, 256
      %942 = vsyncadd [#allocation4], %s941
      %s943 = sshll.u32 [#allocation11], 4
      %s944 = int_to_ptr.vmem [resolvable:$true] %s943
      %949 = dma.vmem_to_hbm [thread:$0]  %s944, 256, %s5, [#allocation4], 128, 128, 8
    $region45: #{tpu_custom_call.1} parent=1 // pred_fallthru
      _
    // Predicated region
    $region46: #{tpu_custom_call.1} parent=1 // pred_check
      _
    $region47: #{tpu_custom_call.1} parent=1 // pred_check_branch
      %951 = sbr.rel (0) target = $region49
    $region48: #{tpu_custom_call.1} parent=1 // pred_region
      %952 = dma.done [#allocation4], 256
    $region49: #{tpu_custom_call.1} parent=1 // pred_fallthru
      _
    %953 = vsyncpa [#allocation3], 1
    %954 = vsyncpa [#allocation6], 1
    %955 = vsyncpa [#allocation9], 1
    %956 = vsyncpa [#allocation4], 1

</llo_original>
